<compile_context>
chip_gen: v7x
topology: tpu7x:2x2x1
jax: 0.10.0
libtpu: 0.0.40
codegen_flags: <defaults>
</compile_context>

<pallas_src>
import functools

import jax
import jax.numpy as jnp
from jax.experimental import pallas as pl
from jax.experimental.pallas import tpu as pltpu

_EPS = 1e-5


# ----------------------------------------------------------------------------
# Pallas kernels
# ----------------------------------------------------------------------------
def _stage1_kernel(x_ref, w_ref, shift_ref, minv_ref, o_ref):
    # All 1x1 convs of the module as one matmul (BN scale pre-folded into W),
    # + per-column shift, + per-column ReLU as a lower bound.
    y = jnp.dot(x_ref[...], w_ref[...], preferred_element_type=jnp.float32)
    y = jnp.maximum(y + shift_ref[...], minv_ref[...])
    o_ref[...] = y.astype(o_ref.dtype)


def _stage2_kernel(ymid_ref, wt_ref, scale_ref, shift_ref, *rest,
                   K, dilations, bc, T, V, pad_max, res_mode):
    if res_mode == "input":
        res_ref, o_ref, ypad = rest
    else:
        o_ref, ypad = rest
    L = T * V
    nd = len(dilations)
    Cb = (nd + 1) * bc            # channels that need temporal processing
    H = pad_max * V               # halo rows on each side

    # Zero-padded copy (in VMEM) of the activations feeding the temporal
    # branches; replaces the jnp.pad HBM round trip of the previous version.
    ypad[pl.ds(0, H), :] = jnp.zeros((H, Cb), jnp.float32)
    ypad[pl.ds(H + L, H), :] = jnp.zeros((H, Cb), jnp.float32)
    ypad[pl.ds(H, L), :] = ymid_ref[0, :, 0:Cb].astype(jnp.float32)

    cols = []
    # Dilated temporal convs: K shifted views concatenated along channels and
    # contracted with a single (K*bc, bc) weight (BN2 scale pre-folded).
    for i, d in enumerate(dilations):
        pad_i = (K - 1) * d // 2
        taps = [ypad[pl.ds((pad_max - pad_i + k * d) * V, L),
                     pl.ds(i * bc, bc)] for k in range(K)]
        xin = jnp.concatenate(taps, axis=-1)                       # (L, K*bc)
        cols.append(jnp.dot(xin, wt_ref[i],
                            preferred_element_type=jnp.float32))   # (L, bc)

    # Max-pool branch: window (3,1), stride 1, pad (1,0).  Inputs are
    # post-ReLU (>= 0) so the zero halo is equivalent to -inf padding.
    mp0 = (pad_max - 1) * V
    mp_lo = nd * bc
    m = ypad[pl.ds(mp0, L), pl.ds(mp_lo, bc)]
    m = jnp.maximum(m, ypad[pl.ds(mp0 + V, L), pl.ds(mp_lo, bc)])
    m = jnp.maximum(m, ypad[pl.ds(mp0 + 2 * V, L), pl.ds(mp_lo, bc)])
    cols.append(m)

    # Plain 1x1 branch: already final after stage 1.
    cols.append(ymid_ref[0, :, (nd + 1) * bc:(nd + 2) * bc].astype(jnp.float32))

    y = jnp.concatenate(cols, axis=-1)                             # (L, Cout)
    y = y * scale_ref[...] + shift_ref[...]
    if res_mode == "fused":            # residual 1x1 conv was computed in stage 1
        Cout = (nd + 2) * bc
        r0 = (nd + 2) * bc
        y = y + ymid_ref[0, :, r0:r0 + Cout].astype(jnp.float32)
    elif res_mode == "input":          # identity residual
        y = y + res_ref[0].astype(jnp.float32)
    o_ref[0] = y.astype(o_ref.dtype)


# ----------------------------------------------------------------------------
# pallas_call wrappers
# ----------------------------------------------------------------------------
def _round_up(x, m):
    return -(-x // m) * m


def _stage1(x_flat, w_all, shift_all, minv_all, *, tm=None):
    M, Cin = x_flat.shape
    C1 = w_all.shape[1]
    if tm is None:
        tm = 512 if M >= 2048 else 256     # >=2 grid blocks for 2-TC chips
    Mp = _round_up(M, tm)
    if Mp != M:                            # cdiv-gridding: pad ragged tail
        x_flat = jnp.pad(x_flat, ((0, Mp - M), (0, 0)))
    out = pl.pallas_call(
        _stage1_kernel,
        out_shape=jax.ShapeDtypeStruct((Mp, C1), x_flat.dtype),
        grid=(Mp // tm,),
        in_specs=[
            pl.BlockSpec((tm, Cin), lambda i: (i, 0)),
            pl.BlockSpec((Cin, C1), lambda i: (0, 0)),
            pl.BlockSpec((1, C1), lambda i: (0, 0)),
            pl.BlockSpec((1, C1), lambda i: (0, 0)),
        ],
        out_specs=pl.BlockSpec((tm, C1), lambda i: (i, 0)),
        compiler_params=pltpu.CompilerParams(dimension_semantics=("parallel",)),
    )(x_flat, w_all, shift_all, minv_all)
    return out[:M] if Mp != M else out


def _stage2(ymid, wt_all, scale2, shift2, res, *, K, dilations, bc, T, V,
            out_dtype, res_mode):
    N, L, C1 = ymid.shape
    nd = len(dilations)
    Cout = (nd + 2) * bc
    pad_max = max((K - 1) * max(dilations) // 2, 1)   # >=1 for the max-pool halo
    Lp = L + 2 * pad_max * V
    Cb = (nd + 1) * bc
    kernel = functools.partial(_stage2_kernel, K=K, dilations=tuple(dilations),
                               bc=bc, T=T, V=V, pad_max=pad_max,
                               res_mode=res_mode)
    in_specs = [
        pl.BlockSpec((1, L, C1), lambda n: (n, 0, 0)),
        pl.BlockSpec(wt_all.shape, lambda n: (0, 0, 0)),
        pl.BlockSpec((1, Cout), lambda n: (0, 0)),
        pl.BlockSpec((1, Cout), lambda n: (0, 0)),
    ]
    args = [ymid, wt_all, scale2, shift2]
    if res_mode == "input":
        in_specs.append(pl.BlockSpec((1, L, Cout), lambda n: (n, 0, 0)))
        args.append(res)
    # TODO(synk): for very long sequences, tile the T axis with a
    # (K-1)*max(dilation) halo instead of one (T*V, C) slab per batch element.
    return pl.pallas_call(
        kernel,
        out_shape=jax.ShapeDtypeStruct((N, L, Cout), out_dtype),
        grid=(N,),
        in_specs=in_specs,
        out_specs=pl.BlockSpec((1, L, Cout), lambda n: (n, 0, 0)),
        scratch_shapes=[pltpu.VMEM((Lp, Cb), jnp.float32)],
        compiler_params=pltpu.CompilerParams(dimension_semantics=("parallel",)),
    )(*args)


# ----------------------------------------------------------------------------
# Parameter init + host-side BN folding + full module forward
# ----------------------------------------------------------------------------
def fold_bn(bn, conv_bias=None):
    gamma, beta, mean, var = bn
    scale = gamma / jnp.sqrt(var + _EPS)
    b = conv_bias if conv_bias is not None else 0.0
    shift = beta + (b - mean) * scale
    return scale, shift


def init_params(key, in_channels, out_channels, kernel_size, dilations):
    nb = len(dilations) + 2
    assert out_channels % nb == 0
    bc = out_channels // nb
    keys = iter(jax.random.split(key, 64))

    def bn_params(c):
        return (1.0 + 0.02 * jax.random.normal(next(keys), (c,), jnp.float32),
                jnp.zeros((c,), jnp.float32),
                jnp.zeros((c,), jnp.float32),
                jnp.ones((c,), jnp.float32))

    def conv_w(shape, fan_out):
        return ((2.0 / fan_out) ** 0.5) * jax.random.normal(next(keys), shape, jnp.float32)

    branches = []
    for _ in dilations:
        branches.append(dict(
            w1=conv_w((in_channels, bc), bc), b1=jnp.zeros((bc,), jnp.float32),
            bn1=bn_params(bc),
            wt=conv_w((kernel_size, bc, bc), bc * kernel_size),
            bt=jnp.zeros((bc,), jnp.float32), bn2=bn_params(bc)))
    branches.append(dict(  # max-pool branch
        w1=conv_w((in_channels, bc), bc), b1=jnp.zeros((bc,), jnp.float32),
        bn1=bn_params(bc), bn2=bn_params(bc)))
    branches.append(dict(  # plain 1x1 branch
        w1=conv_w((in_channels, bc), bc), b1=jnp.zeros((bc,), jnp.float32),
        bn1=bn_params(bc)))
    params = dict(branch_channels=bc, branches=branches)
    if in_channels != out_channels:
        params['residual'] = dict(
            w=conv_w((in_channels, out_channels), out_channels),
            b=jnp.zeros((out_channels,), jnp.float32),
            bn=bn_params(out_channels))
    return params


def multiscale_temporal_conv(x_nchw, params, *, kernel_size=3,
                             dilations=(1, 2, 3, 4), stride=1, residual=True):
    assert stride == 1  # TODO(synk): stride>1 temporal downsampling not implemented (module default is 1)
    for d in dilations:
        assert (kernel_size - 1) * d % 2 == 0  # TODO(synk): odd receptive field (T_out = T-1) not needed for K=3

    x = jnp.transpose(x_nchw, (0, 2, 3, 1))          # (N, T, V, Cin)
    N, T, V, Cin = x.shape
    bc = params['branch_channels']
    nd = len(dilations)
    nb = nd + 2
    Cout = nb * bc
    M = N * T * V
    x_flat = x.reshape(M, Cin)

    branches = params['branches']
    neg_inf = jnp.float32(-jnp.inf)

    # --- stage-1 weights: every 1x1 conv of the module fused into one matmul
    w_cols, shift_cols, minv_cols = [], [], []
    for bi in range(nb):
        p = branches[bi]
        s1, h1 = fold_bn(p['bn1'], p['b1'])
        w_cols.append(p['w1'] * s1[None, :])
        shift_cols.append(h1)
        has_relu = bi < nb - 1                       # plain 1x1 branch has no ReLU
        minv_cols.append(jnp.full((bc,), 0.0 if has_relu else neg_inf, jnp.float32))

    res_mode, res_in = "none", None                  # residual=False: nothing streamed
    if residual:
        if Cin == Cout:
            res_mode, res_in = "input", x.reshape(N, T * V, Cout)
        else:
            res_mode = "fused"                       # residual 1x1 conv rides stage 1
            p = params['residual']
            sr, hr = fold_bn(p['bn'], p['b'])
            w_cols.append(p['w'] * sr[None, :])
            shift_cols.append(hr)
            minv_cols.append(jnp.full((Cout,), neg_inf, jnp.float32))

    w_all = jnp.concatenate(w_cols, axis=1)
    shift_all = jnp.concatenate(shift_cols)[None, :]
    minv_all = jnp.concatenate(minv_cols)[None, :]

    # --- stage-2 weights: temporal taps with BN2 scale folded in ------------
    wt_list, sc2, sh2 = [], [], []
    for bi in range(nd):
        p = branches[bi]
        s2, h2 = fold_bn(p['bn2'], p['bt'])
        wt_list.append(p['wt'].reshape(kernel_size * bc, bc) * s2[None, :])
        sc2.append(jnp.ones((bc,), jnp.float32))     # scale already in weights
        sh2.append(h2)
    s2m, h2m = fold_bn(branches[nd]['bn2'], None)    # max-pool branch BN (can't fold through max)
    sc2.append(s2m)
    sh2.append(h2m)
    sc2.append(jnp.ones((bc,), jnp.float32))         # plain branch: already final
    sh2.append(jnp.zeros((bc,), jnp.float32))
    wt_all = jnp.stack(wt_list)                      # (nd, K*bc, bc)
    scale2 = jnp.concatenate(sc2)[None, :]           # (1, Cout)
    shift2 = jnp.concatenate(sh2)[None, :]           # (1, Cout)

    ymid = _stage1(x_flat, w_all, shift_all, minv_all).reshape(N, T * V, -1)
    out = _stage2(ymid, wt_all, scale2, shift2, res_in, K=kernel_size,
                  dilations=dilations, bc=bc, T=T, V=V,
                  out_dtype=x.dtype, res_mode=res_mode)          # (N, T*V, Cout)
    return jnp.transpose(out.reshape(N, T, V, Cout), (0, 3, 1, 2))  # NCHW


# ----------------------------------------------------------------------------
# Pure-JAX reference (lax.conv / reduce_window) for verification
# ----------------------------------------------------------------------------
def reference_forward(x_nchw, params, kernel_size, dilations, residual=True):
    x = jnp.transpose(x_nchw, (0, 2, 3, 1))
    bc = params['branch_channels']

    def bn(y, p):
        g, b, m, v = p
        return (y - m) / jnp.sqrt(v + _EPS) * g + b

    def conv(y, w_hwio, bias, padding, rhs_dil):
        o = jax.lax.conv_general_dilated(
            y, w_hwio, window_strides=(1, 1), padding=padding,
            rhs_dilation=rhs_dil, dimension_numbers=('NHWC', 'HWIO', 'NHWC'))
        return o + bias

    Cin = x.shape[-1]
    Cout = bc * (len(dilations) + 2)
    if not residual:
        res = 0.0
    elif Cin == Cout:
        res = x
    else:
        p = params['residual']
        res = bn(conv(x, p['w'][None, None], p['b'], ((0, 0), (0, 0)), (1, 1)), p['bn'])

    outs = []
    for bi, d in enumerate(dilations):
        p = params['branches'][bi]
        y = jax.nn.relu(bn(conv(x, p['w1'][None, None], p['b1'], ((0, 0), (0, 0)), (1, 1)), p['bn1']))
        pad = (kernel_size - 1) * d // 2
        y = conv(y, p['wt'][:, None], p['bt'], ((pad, pad), (0, 0)), (d, 1))
        outs.append(bn(y, p['bn2']))
    p = params['branches'][len(dilations)]
    y = jax.nn.relu(bn(conv(x, p['w1'][None, None], p['b1'], ((0, 0), (0, 0)), (1, 1)), p['bn1']))
    y = jax.lax.reduce_window(y, -jnp.inf, jax.lax.max, (1, 3, 1, 1), (1, 1, 1, 1),
                              ((0, 0), (1, 1), (0, 0), (0, 0)))
    outs.append(bn(y, p['bn2']))
    p = params['branches'][len(dilations) + 1]
    outs.append(bn(conv(x, p['w1'][None, None], p['b1'], ((0, 0), (0, 0)), (1, 1)), p['bn1']))
    out = jnp.concatenate(outs, axis=-1) + res
    return jnp.transpose(out, (0, 3, 1, 2))


# ----------------------------------------------------------------------------
if __name__ == "__main__":
    key = jax.random.PRNGKey(0)
    dilations = (1, 2, 3, 4)
    ks = 3
    configs = [
        # (N, Cin, Cout, T, V, residual)
        (2, 16, 48, 16, 16, True),    # 1x1-conv residual (fused into stage-1 matmul)
        (2, 48, 48, 16, 16, True),    # identity residual
        (2, 16, 48, 16, 16, False),   # no residual
    ]
    ok = True
    for ci, (N, Cin, Cout, T, V, residual) in enumerate(configs):
        kx, kp = jax.random.split(jax.random.fold_in(key, ci))
        x = jax.random.normal(kx, (N, Cin, T, V), jnp.float32)
        params = init_params(kp, Cin, Cout, ks, dilations)
        out = jax.block_until_ready(
            multiscale_temporal_conv(x, params, kernel_size=ks,
                                     dilations=dilations, residual=residual))
        ref = reference_forward(x, params, ks, dilations, residual=residual)
        assert out.shape == (N, Cout, T, V)
        err = float(jnp.max(jnp.abs(out - ref)))
        if err > 2e-3:
            ok = False
            print(f"config {ci}: mismatch, max abs err = {err}")
    if ok:
        print("KERNEL_OK")
    else:
        raise SystemExit("numerical mismatch")
</pallas_src>

<mosaic_0001>
module attributes {stable_mosaic.version = 11 : i64} {
  func.func @_stage1_kernel(%arg0: i32, %arg1: memref<256x16xf32, #tpu.memory_space<vmem>>, %arg2: memref<16x96xf32, #tpu.memory_space<vmem>>, %arg3: memref<1x96xf32, #tpu.memory_space<vmem>>, %arg4: memref<1x96xf32, #tpu.memory_space<vmem>>, %arg5: memref<256x96xf32, #tpu.memory_space<vmem>>) attributes {dimension_semantics = [#tpu.dimension_semantics<parallel>], iteration_bounds = array<i64: 2>, scalar_prefetch = 0 : i64, scratch_operands = 0 : i64, tpu.core_type = #tpu.core_type<tc>, window_params = [{transform_indices = @transform_0, window_bounds = array<i64: 256, 16>}, {pipeline_mode = #tpu.pipeline_mode<synchronous>, transform_indices = @transform_1, window_bounds = array<i64: 16, 96>}, {pipeline_mode = #tpu.pipeline_mode<synchronous>, transform_indices = @transform_2, window_bounds = array<i64: 1, 96>}, {pipeline_mode = #tpu.pipeline_mode<synchronous>, transform_indices = @transform_3, window_bounds = array<i64: 1, 96>}, {transform_indices = @transform_4, window_bounds = array<i64: 256, 96>}]} {
    %c0 = arith.constant 0 : index
    %c0_0 = arith.constant 0 : index
    %0 = vector.load %arg1[%c0, %c0_0] : memref<256x16xf32, #tpu.memory_space<vmem>>, vector<256x16xf32>
    %c0_1 = arith.constant 0 : index
    %c0_2 = arith.constant 0 : index
    %1 = vector.load %arg2[%c0_1, %c0_2] : memref<16x96xf32, #tpu.memory_space<vmem>>, vector<16x96xf32>
    %cst = arith.constant dense<0.000000e+00> : vector<256x96xf32>
    %2 = tpu.matmul %0, %1, %cst {dimension_numbers = #tpu.dot_dimension_numbers<[1], [0], [0], [1], [0, 0, 1, 1], [], []>} : vector<256x16xf32>, vector<16x96xf32>, vector<256x96xf32> -> vector<256x96xf32>
    %c0_3 = arith.constant 0 : index
    %c0_4 = arith.constant 0 : index
    %3 = vector.load %arg3[%c0_3, %c0_4] : memref<1x96xf32, #tpu.memory_space<vmem>>, vector<1x96xf32>
    %4 = vector.broadcast %3 : vector<1x96xf32> to vector<256x96xf32>
    %5 = arith.addf %2, %4 : vector<256x96xf32>
    %c0_5 = arith.constant 0 : index
    %c0_6 = arith.constant 0 : index
    %6 = vector.load %arg4[%c0_5, %c0_6] : memref<1x96xf32, #tpu.memory_space<vmem>>, vector<1x96xf32>
    %7 = vector.broadcast %6 : vector<1x96xf32> to vector<256x96xf32>
    %8 = arith.maximumf %5, %7 : vector<256x96xf32>
    %c0_7 = arith.constant 0 : index
    %c0_8 = arith.constant 0 : index
    %9 = vector.load %arg5[%c0_7, %c0_8] : memref<256x96xf32, #tpu.memory_space<vmem>>, vector<256x96xf32>
    tpu.vector_store %arg5[%c0_7, %c0_8], %8 {strides = array<i32>} : memref<256x96xf32, #tpu.memory_space<vmem>>, vector<256x96xf32>,
    return
  }
  func.func @transform_0(%arg0: i32) -> (i32, i32) {
    %c0_i32 = arith.constant 0 : i32
    %c0_i32_0 = arith.constant 0 : i32
    return %arg0, %c0_i32 : i32, i32
  }
  func.func @transform_1(%arg0: i32) -> (i32, i32) {
    %c0_i32 = arith.constant 0 : i32
    %c0_i32_0 = arith.constant 0 : i32
    %c0_i32_1 = arith.constant 0 : i32
    return %c0_i32, %c0_i32_0 : i32, i32
  }
  func.func @transform_2(%arg0: i32) -> (i32, i32) {
    %c0_i32 = arith.constant 0 : i32
    %c0_i32_0 = arith.constant 0 : i32
    %c0_i32_1 = arith.constant 0 : i32
    return %c0_i32, %c0_i32_0 : i32, i32
  }
  func.func @transform_3(%arg0: i32) -> (i32, i32) {
    %c0_i32 = arith.constant 0 : i32
    %c0_i32_0 = arith.constant 0 : i32
    %c0_i32_1 = arith.constant 0 : i32
    return %c0_i32, %c0_i32_0 : i32, i32
  }
  func.func @transform_4(%arg0: i32) -> (i32, i32) {
    %c0_i32 = arith.constant 0 : i32
    %c0_i32_0 = arith.constant 0 : i32
    return %arg0, %c0_i32 : i32, i32
  }
}

</mosaic_0001>

<llo_original>
// kernel: tpu_custom_call.1
$region0: #{tpu_custom_call.1}
  #allocation0 [shape = 'u32[]', space=smem, size = 0x4, offset = 0x4, fixed_abs, tag = 'smem constant byte address 0x4 - core index']
  #allocation1 [shape = 'u32[144,128]{1,0:T(1,128)}', space=vmem, size = 0x12000, scoped, tag = 'internal scratch']
  %s0 = inlined_call_operand.vmem [shape: f32[512,16], index: 0, kind: input, shape index: {}]
  %s1 = inlined_call_operand.vmem [shape: f32[16,96], index: 1, kind: input, shape index: {}]
  %s2 = inlined_call_operand.vmem [shape: f32[1,96], index: 2, kind: input, shape index: {}]
  %s3 = inlined_call_operand.vmem [shape: f32[1,96], index: 3, kind: input, shape index: {}]
  %s4 = inlined_call_operand.vmem [shape: f32[512,96], index: 4, kind: output, shape index: {}]
  %s5 = sld [smem:[#allocation0]]
  $region49: #{tpu_custom_call.1} parent=0
    _
  %s7 = ssub.s32 1, %s5
  %s8 = scalar_select 0, %s7, %s5
  loop: start=0, step=1, limit=4
  $region2: #{tpu_custom_call.1} parent=0 // loop_pre_header
    _
  $region3: #{tpu_custom_call.1} parent=0 // loop_header
    %s10 = sphi 0, %s14
    %p11 = scmp.ge.s32.totalorder %s10, 4
    %s20 = sphi 0, %s22
    %s23 = sphi 0, %s20
    %s24 = sphi 0, %s23
    %s40 = sphi 0, %s24
    %s44 = sphi 0, %s44
    %s46 = sphi 0, %s44
    %s47 = sphi 0, %s46
    %s61 = sphi 0, %s47
    %s65 = sphi 0, %s65
    %s67 = sphi 0, %s65
    %s68 = sphi 0, %s67
    %s82 = sphi 0, %s68
    %s86 = sphi 0, %s86
    %s88 = sphi 0, %s86
    %s89 = sphi 0, %s88
    %s103 = sphi 0, %s89
    %s109 = sphi 0, %s111
    %s112 = sphi 0, %s109
    %s113 = sphi 0, %s112
    %s129 = sphi 0, %s113
  $region4: #{tpu_custom_call.1} parent=0 // loop_header_branch
    %13 = sbr.rel (%p11) target = $region8
  $region5: #{tpu_custom_call.1} parent=0 // loop_body
    %s15 = ssub.s32 %s10, 1
    %s16 = ssub.s32 %s10, 2
    %s17 = sadd.s32 %s10, 1
    %s18 = ssub.s32 %s10, %s17
    %p19 = scmp.eq.s32.totalorder %s18, 0
    %s21 = sadd.s32 %s20, 1
    %s22 = scalar_select %p19, %s20, %s21
    %p25 = pneg %p19
    %p26 = scmp.eq.s32.totalorder %s10, 1
    %p27 = por %p25, %p26
    %p28 = scmp.ne.s32.totalorder %s20, %s23
    %p29 = scmp.eq.s32.totalorder %s10, 0
    %p30 = por %p28, %p29
    %p31 = scmp.ne.s32.totalorder %s20, %s23
    %p32 = scmp.eq.s32.totalorder %s15, 1
    %p33 = por %p31, %p32
    %p34 = scmp.ne.s32.totalorder %s23, %s24
    %p35 = scmp.eq.s32.totalorder %s15, 0
    %p36 = por %p34, %p35
    %p37 = scmp.ne.s32.totalorder %s23, %s24
    %p38 = scmp.eq.s32.totalorder %s16, 1
    %p39 = por %p37, %p38
    %p41 = scmp.ne.s32.totalorder %s24, %s40
    %p42 = scmp.eq.s32.totalorder %s16, 0
    %p43 = por %p41, %p42
    %s45 = sadd.s32 %s44, 1
    %p48 = scmp.eq.s32.totalorder %s10, 1
    %p49 = scmp.ne.s32.totalorder %s44, %s46
    %p50 = scmp.eq.s32.totalorder %s10, 0
    %p51 = por %p49, %p50
    %p52 = scmp.ne.s32.totalorder %s44, %s46
    %p53 = scmp.eq.s32.totalorder %s15, 1
    %p54 = por %p52, %p53
    %p55 = scmp.ne.s32.totalorder %s46, %s47
    %p56 = scmp.eq.s32.totalorder %s15, 0
    %p57 = por %p55, %p56
    %p58 = scmp.ne.s32.totalorder %s46, %s47
    %p59 = scmp.eq.s32.totalorder %s16, 1
    %p60 = por %p58, %p59
    %p62 = scmp.ne.s32.totalorder %s47, %s61
    %p63 = scmp.eq.s32.totalorder %s16, 0
    %p64 = por %p62, %p63
    %s66 = sadd.s32 %s65, 1
    %p69 = scmp.eq.s32.totalorder %s10, 1
    %p70 = scmp.ne.s32.totalorder %s65, %s67
    %p71 = scmp.eq.s32.totalorder %s10, 0
    %p72 = por %p70, %p71
    %p73 = scmp.ne.s32.totalorder %s65, %s67
    %p74 = scmp.eq.s32.totalorder %s15, 1
    %p75 = por %p73, %p74
    %p76 = scmp.ne.s32.totalorder %s67, %s68
    %p77 = scmp.eq.s32.totalorder %s15, 0
    %p78 = por %p76, %p77
    %p79 = scmp.ne.s32.totalorder %s67, %s68
    %p80 = scmp.eq.s32.totalorder %s16, 1
    %p81 = por %p79, %p80
    %p83 = scmp.ne.s32.totalorder %s68, %s82
    %p84 = scmp.eq.s32.totalorder %s16, 0
    %p85 = por %p83, %p84
    %s87 = sadd.s32 %s86, 1
    %p90 = scmp.eq.s32.totalorder %s10, 1
    %p91 = scmp.ne.s32.totalorder %s86, %s88
    %p92 = scmp.eq.s32.totalorder %s10, 0
    %p93 = por %p91, %p92
    %p94 = scmp.ne.s32.totalorder %s86, %s88
    %p95 = scmp.eq.s32.totalorder %s15, 1
    %p96 = por %p94, %p95
    %p97 = scmp.ne.s32.totalorder %s88, %s89
    %p98 = scmp.eq.s32.totalorder %s15, 0
    %p99 = por %p97, %p98
    %p100 = scmp.ne.s32.totalorder %s88, %s89
    %p101 = scmp.eq.s32.totalorder %s16, 1
    %p102 = por %p100, %p101
    %p104 = scmp.ne.s32.totalorder %s89, %s103
    %p105 = scmp.eq.s32.totalorder %s16, 0
    %p106 = por %p104, %p105
    %s107 = ssub.s32 %s10, %s17
    %p108 = scmp.eq.s32.totalorder %s107, 0
    %s110 = sadd.s32 %s109, 1
    %s111 = scalar_select %p108, %s109, %s110
    %p114 = pneg %p108
    %p115 = scmp.eq.s32.totalorder %s10, 1
    %p116 = por %p114, %p115
    %p117 = scmp.ne.s32.totalorder %s109, %s112
    %p118 = scmp.eq.s32.totalorder %s10, 0
    %p119 = por %p117, %p118
    %p120 = scmp.ne.s32.totalorder %s109, %s112
    %p121 = scmp.eq.s32.totalorder %s15, 1
    %p122 = por %p120, %p121
    %p123 = scmp.ne.s32.totalorder %s112, %s113
    %p124 = scmp.eq.s32.totalorder %s15, 0
    %p125 = por %p123, %p124
    %p126 = scmp.ne.s32.totalorder %s112, %s113
    %p127 = scmp.eq.s32.totalorder %s16, 1
    %p128 = por %p126, %p127
    %p130 = scmp.ne.s32.totalorder %s113, %s129
    %p131 = scmp.eq.s32.totalorder %s16, 0
    %p132 = por %p130, %p131
    %p133 = scmp.le.s32.totalorder 1, %s10
    %p134 = scmp.lt.s32.totalorder %s10, 3
    %p135 = pnand %p133, %p134
    %p136 = pneg %p135
    // Predicated region
    $region9: #{tpu_custom_call.1} parent=5 // pred_check
      _
    $region10: #{tpu_custom_call.1} parent=5 // pred_check_branch
      %138 = sbr.rel (%p135) target = $region12
    $region11: #{tpu_custom_call.1} parent=5 // pred_region
      %s139 = ssub.s32 %s10, 1
      // Predicated region
      $region13: #{tpu_custom_call.1} parent=11 // pred_check
        %p140 = pneg %p57
      $region14: #{tpu_custom_call.1} parent=11 // pred_check_branch
        %142 = sbr.rel (%p140) target = $region16
      $region15: #{tpu_custom_call.1} parent=11 // pred_region
        _
      $region16: #{tpu_custom_call.1} parent=11 // pred_fallthru
        _
      // Predicated region
      $region17: #{tpu_custom_call.1} parent=11 // pred_check
        %p143 = pneg %p78
      $region18: #{tpu_custom_call.1} parent=11 // pred_check_branch
        %145 = sbr.rel (%p143) target = $region20
      $region19: #{tpu_custom_call.1} parent=11 // pred_region
        _
      $region20: #{tpu_custom_call.1} parent=11 // pred_fallthru
        _
      // Predicated region
      $region21: #{tpu_custom_call.1} parent=11 // pred_check
        %p146 = pneg %p99
      $region22: #{tpu_custom_call.1} parent=11 // pred_check_branch
        %148 = sbr.rel (%p146) target = $region24
      $region23: #{tpu_custom_call.1} parent=11 // pred_region
        _
      $region24: #{tpu_custom_call.1} parent=11 // pred_fallthru
        _
    $region12: #{tpu_custom_call.1} parent=5 // pred_fallthru
      _
    %p149 = scmp.lt.s32.totalorder %s10, 2
    // Predicated region
    $region25: #{tpu_custom_call.1} parent=5 // pred_check
      %p150 = pneg %p149
    $region26: #{tpu_custom_call.1} parent=5 // pred_check_branch
      %152 = sbr.rel (%p150) target = $region28
    $region27: #{tpu_custom_call.1} parent=5 // pred_region
      // Predicated region
      $region29: #{tpu_custom_call.1} parent=27 // pred_check
        %p153 = pneg %p30
      $region30: #{tpu_custom_call.1} parent=27 // pred_check_branch
        %155 = sbr.rel (%p153) target = $region32
      $region31: #{tpu_custom_call.1} parent=27 // pred_region
        %s156 = smul.u32 32, %s10
        %p157 = scmp.lt.s32.totalorder %s156, 63
        %s158 = scalar_select %p157, %s156, 63
        %s159 = smul.addr %s158, 8
        %s160 = scalar_lea.vmem %s0, %s159
        %s161 = smul.u32 32, %s10
      $region32: #{tpu_custom_call.1} parent=27 // pred_fallthru
        _
    $region28: #{tpu_custom_call.1} parent=5 // pred_fallthru
      _
    %p162 = scmp.le.s32.totalorder 1, %s10
    %p163 = scmp.lt.s32.totalorder %s10, 3
    %p164 = pnand %p162, %p163
    %p165 = pneg %p164
    // Predicated region
    $region33: #{tpu_custom_call.1} parent=5 // pred_check
      _
    $region34: #{tpu_custom_call.1} parent=5 // pred_check_branch
      %167 = sbr.rel (%p164) target = $region36
    $region35: #{tpu_custom_call.1} parent=5 // pred_region
      %s168 = ssub.s32 %s10, 1
      %s169 = smul.u32 32, %s15
      %p170 = scmp.lt.s32.totalorder %s169, 63
      %s171 = scalar_select %p170, %s169, 63
      %s172 = smul.addr %s171, 8
      %s173 = scalar_lea.vmem %s0, %s172
      %p174 = pneg %p36
      %p175 = pneg %p33
      %p176 = pneg %p57
      %p177 = pneg %p54
      %p178 = pneg %p78
      %p179 = pneg %p75
      %p180 = pneg %p99
      %p181 = pneg %p96
      %p182 = pneg %p125
      %p183 = pneg %p122
      %s184 = smul.u32 32, %s15
      %p185 = scmp.lt.s32.totalorder %s184, 63
      %s186 = scalar_select %p185, %s184, 63
      %s187 = smul.addr %s186, 8
      %s188 = scalar_lea.vmem %s4, %s187
      %s189 = smul.u32 32, %s15
      %p190 = scmp.lt.s32.totalorder %s189, 63
      %s191 = scalar_select %p190, %s189, 63
      %s192 = smul.addr %s191, 8
      %s193 = scalar_lea.vmem %s0, %s192
      %s194 = smul.u32 32, %s15
      %s195 = smul.u32 32, %s15
      %p196 = scmp.lt.s32.totalorder %s195, 63
      %s197 = scalar_select %p196, %s195, 63
      %s198 = smul.addr %s197, 8
      %s199 = scalar_lea.vmem %s4, %s198
      %s200 = smul.u32 32, %s15
      %v201 = vld [vmem:[%s193] sm:$0xff]
      %v202 = vld [vmem:[%s193 + $0x8] sm:$0xff]
      %v203 = vld [vmem:[%s193 + $0x10] sm:$0xff]
      %v204 = vld [vmem:[%s193 + $0x18] sm:$0xff]
      %v205 = vld [vmem:[%s193 + $0x20] sm:$0xff]
      %v206 = vld [vmem:[%s193 + $0x28] sm:$0xff]
      %v207 = vld [vmem:[%s193 + $0x30] sm:$0xff]
      %v208 = vld [vmem:[%s193 + $0x38] sm:$0xff]
      %v209 = vld [vmem:[%s193 + $0x40] sm:$0xff]
      %v210 = vld [vmem:[%s193 + $0x48] sm:$0xff]
      %v211 = vld [vmem:[%s193 + $0x50] sm:$0xff]
      %v212 = vld [vmem:[%s193 + $0x58] sm:$0xff]
      %v213 = vld [vmem:[%s193 + $0x60] sm:$0xff]
      %v214 = vld [vmem:[%s193 + $0x68] sm:$0xff]
      %v215 = vld [vmem:[%s193 + $0x70] sm:$0xff]
      %v216 = vld [vmem:[%s193 + $0x78] sm:$0xff]
      %v217 = vld [vmem:[%s193 + $0x80] sm:$0xff]
      %v218 = vld [vmem:[%s193 + $0x88] sm:$0xff]
      %v219 = vld [vmem:[%s193 + $0x90] sm:$0xff]
      %v220 = vld [vmem:[%s193 + $0x98] sm:$0xff]
      %v221 = vld [vmem:[%s193 + $0xa0] sm:$0xff]
      %v222 = vld [vmem:[%s193 + $0xa8] sm:$0xff]
      %v223 = vld [vmem:[%s193 + $0xb0] sm:$0xff]
      %v224 = vld [vmem:[%s193 + $0xb8] sm:$0xff]
      %v225 = vld [vmem:[%s193 + $0xc0] sm:$0xff]
      %v226 = vld [vmem:[%s193 + $0xc8] sm:$0xff]
      %v227 = vld [vmem:[%s193 + $0xd0] sm:$0xff]
      %v228 = vld [vmem:[%s193 + $0xd8] sm:$0xff]
      %v229 = vld [vmem:[%s193 + $0xe0] sm:$0xff]
      %v230 = vld [vmem:[%s193 + $0xe8] sm:$0xff]
      %v231 = vld [vmem:[%s193 + $0xf0] sm:$0xff]
      %v232 = vld [vmem:[%s193 + $0xf8] sm:$0xff]
      %v233 = vld [vmem:[%s1] sm:$0xff]
      %v234 = vld [vmem:[%s1 + $0x8] sm:$0xff]
      %v235 = vld [vmem:[%s2] sm:$0x1]
      %v237 = vlaneseq
      %v238 = vshrl.u32 %v237, 7
      %v239 = vsub.s32 0, %v238
      %v240 = vrot.slane %v235, %v239
      %vm242 = vcmask 130048
      %v244 = vsel %vm242, %v201, 0
      %v247 = vsel %vm242, %v202, 0
      %v250 = vsel %vm242, %v203, 0
      %v253 = vsel %vm242, %v204, 0
      %v256 = vsel %vm242, %v205, 0
      %v259 = vsel %vm242, %v206, 0
      %v262 = vsel %vm242, %v207, 0
      %v265 = vsel %vm242, %v208, 0
      %v268 = vsel %vm242, %v209, 0
      %v271 = vsel %vm242, %v210, 0
      %v274 = vsel %vm242, %v211, 0
      %v277 = vsel %vm242, %v212, 0
      %v280 = vsel %vm242, %v213, 0
      %v283 = vsel %vm242, %v214, 0
      %v286 = vsel %vm242, %v215, 0
      %v289 = vsel %vm242, %v216, 0
      %v292 = vsel %vm242, %v217, 0
      %v295 = vsel %vm242, %v218, 0
      %v298 = vsel %vm242, %v219, 0
      %v301 = vsel %vm242, %v220, 0
      %v304 = vsel %vm242, %v221, 0
      %v307 = vsel %vm242, %v222, 0
      %v310 = vsel %vm242, %v223, 0
      %v313 = vsel %vm242, %v224, 0
      %v316 = vsel %vm242, %v225, 0
      %v319 = vsel %vm242, %v226, 0
      %v322 = vsel %vm242, %v227, 0
      %v325 = vsel %vm242, %v228, 0
      %v328 = vsel %vm242, %v229, 0
      %v331 = vsel %vm242, %v230, 0
      %v334 = vsel %vm242, %v231, 0
      %v337 = vsel %vm242, %v232, 0
      %339 = vmatprep.subr.mxu0 0.0
      %340 = vmatpush1.msra.mxu0 %v233
      %341 = vmatprep.subr.mxu0 0.0
      %342 = vmatpush1.msra.mxu0 %v234
      %343 = vmatprep.subr.mxu0 0.0
      %344 = vmatpush1.msra.mxu0 0.0
      %345 = vmatprep.subr.mxu0 0.0
      %346 = vmatpush1.msra.mxu0 0.0
      %347 = vmatprep.subr.mxu0 0.0
      %348 = vmatpush1.msra.mxu0 0.0
      %349 = vmatprep.subr.mxu0 0.0
      %350 = vmatpush1.msra.mxu0 0.0
      %351 = vmatprep.subr.mxu0 0.0
      %352 = vmatpush1.msra.mxu0 0.0
      %353 = vmatprep.subr.mxu0 0.0
      %354 = vmatpush1.msra.mxu0 0.0
      %355 = vmatprep.subr.mxu0 0.0
      %356 = vmatpush1.msra.mxu0 0.0
      %357 = vmatprep.subr.mxu0 0.0
      %358 = vmatpush1.msra.mxu0 0.0
      %359 = vmatprep.subr.mxu0 0.0
      %360 = vmatpush1.msra.mxu0 0.0
      %361 = vmatprep.subr.mxu0 0.0
      %362 = vmatpush1.msra.mxu0 0.0
      %363 = vmatprep.subr.mxu0 0.0
      %364 = vmatpush1.msra.mxu0 0.0
      %365 = vmatprep.subr.mxu0 0.0
      %366 = vmatpush1.msra.mxu0 0.0
      %367 = vmatprep.subr.mxu0 0.0
      %368 = vmatpush1.msra.mxu0 0.0
      %369 = vmatprep.subr.mxu0 0.0
      %370 = vmatpush1.msra.mxu0 0.0
      %371 = vmatprep.subr.mxu0 0.0
      %372 = vmatpush1.msra.mxu0 0.0
      %373 = vmatprep.subr.mxu0 0.0
      %374 = vmatpush1.msra.mxu0 0.0
      %375 = vmatprep.subr.mxu0 0.0
      %376 = vmatpush1.msra.mxu0 0.0
      %377 = vmatprep.subr.mxu0 0.0
      %378 = vmatpush1.msra.mxu0 0.0
      %379 = vmatprep.subr.mxu0 0.0
      %380 = vmatpush1.msra.mxu0 0.0
      %381 = vmatprep.subr.mxu0 0.0
      %382 = vmatpush1.msra.mxu0 0.0
      %383 = vmatprep.subr.mxu0 0.0
      %384 = vmatpush1.msra.mxu0 0.0
      %385 = vmatprep.subr.mxu0 0.0
      %386 = vmatpush1.msra.mxu0 0.0
      %387 = vmatprep.subr.mxu0 0.0
      %388 = vmatpush1.msra.mxu0 0.0
      %389 = vmatprep.subr.mxu0 0.0
      %390 = vmatpush1.msra.mxu0 0.0
      %391 = vmatprep.subr.mxu0 0.0
      %392 = vmatpush1.msra.mxu0 0.0
      %393 = vmatprep.subr.mxu0 0.0
      %394 = vmatpush1.msra.mxu0 0.0
      %395 = vmatprep.subr.mxu0 0.0
      %396 = vmatpush1.msra.mxu0 0.0
      %397 = vmatprep.subr.mxu0 0.0
      %398 = vmatpush1.msra.mxu0 0.0
      %399 = vmatprep.subr.mxu0 0.0
      %400 = vmatpush1.msra.mxu0 0.0
      %401 = vmatprep.subr.mxu0 0.0
      %402 = vmatpush1.msra.mxu0 0.0
      %403 = vmatprep.mubr.f32.mxu0 0.0
      %404 = vmatmul.mubr.f32.gmra.mrb[0].mxu0 %v244
      %v405 = vpop.f32.mrb[0].mxu0
      %v406 = vadd.f32 %v240, %v405
      %v407 = vpop.f32.mrb[0].mxu0
      %408 = vmatprep.mubr.f32.mxu0 0.0
      %409 = vmatmul.mubr.f32.gmra.mrb[0].mxu0 %v247
      %v410 = vpop.f32.mrb[0].mxu0
      %v411 = vadd.f32 %v240, %v410
      %v412 = vpop.f32.mrb[0].mxu0
      %413 = vmatprep.mubr.f32.mxu0 0.0
      %414 = vmatmul.mubr.f32.gmra.mrb[0].mxu0 %v250
      %v415 = vpop.f32.mrb[0].mxu0
      %v416 = vadd.f32 %v240, %v415
      %v417 = vpop.f32.mrb[0].mxu0
      %418 = vmatprep.mubr.f32.mxu0 0.0
      %419 = vmatmul.mubr.f32.gmra.mrb[0].mxu0 %v253
      %v420 = vpop.f32.mrb[0].mxu0
      %v421 = vadd.f32 %v240, %v420
      %v422 = vpop.f32.mrb[0].mxu0
      %423 = vmatprep.mubr.f32.mxu0 0.0
      %424 = vmatmul.mubr.f32.gmra.mrb[0].mxu0 %v256
      %v425 = vpop.f32.mrb[0].mxu0
      %v426 = vadd.f32 %v240, %v425
      %v427 = vpop.f32.mrb[0].mxu0
      %428 = vmatprep.mubr.f32.mxu0 0.0
      %429 = vmatmul.mubr.f32.gmra.mrb[0].mxu0 %v259
      %v430 = vpop.f32.mrb[0].mxu0
      %v431 = vadd.f32 %v240, %v430
      %v432 = vpop.f32.mrb[0].mxu0
      %433 = vmatprep.mubr.f32.mxu0 0.0
      %434 = vmatmul.mubr.f32.gmra.mrb[0].mxu0 %v262
      %v435 = vpop.f32.mrb[0].mxu0
      %v436 = vadd.f32 %v240, %v435
      %v437 = vpop.f32.mrb[0].mxu0
      %438 = vmatprep.mubr.f32.mxu0 0.0
      %439 = vmatmul.mubr.f32.gmra.mrb[0].mxu0 %v265
      %v440 = vpop.f32.mrb[0].mxu0
      %v441 = vadd.f32 %v240, %v440
      %v442 = vpop.f32.mrb[0].mxu0
      %443 = vmatprep.mubr.f32.mxu0 0.0
      %444 = vmatmul.mubr.f32.gmra.mrb[0].mxu0 %v268
      %v445 = vpop.f32.mrb[0].mxu0
      %v446 = vadd.f32 %v240, %v445
      %v447 = vpop.f32.mrb[0].mxu0
      %448 = vmatprep.mubr.f32.mxu0 0.0
      %449 = vmatmul.mubr.f32.gmra.mrb[0].mxu0 %v271
      %v450 = vpop.f32.mrb[0].mxu0
      %v451 = vadd.f32 %v240, %v450
      %v452 = vpop.f32.mrb[0].mxu0
      %453 = vmatprep.mubr.f32.mxu0 0.0
      %454 = vmatmul.mubr.f32.gmra.mrb[0].mxu0 %v274
      %v455 = vpop.f32.mrb[0].mxu0
      %v456 = vadd.f32 %v240, %v455
      %v457 = vpop.f32.mrb[0].mxu0
      %458 = vmatprep.mubr.f32.mxu0 0.0
      %459 = vmatmul.mubr.f32.gmra.mrb[0].mxu0 %v277
      %v460 = vpop.f32.mrb[0].mxu0
      %v461 = vadd.f32 %v240, %v460
      %v462 = vpop.f32.mrb[0].mxu0
      %463 = vmatprep.mubr.f32.mxu0 0.0
      %464 = vmatmul.mubr.f32.gmra.mrb[0].mxu0 %v280
      %v465 = vpop.f32.mrb[0].mxu0
      %v466 = vadd.f32 %v240, %v465
      %v467 = vpop.f32.mrb[0].mxu0
      %468 = vmatprep.mubr.f32.mxu0 0.0
      %469 = vmatmul.mubr.f32.gmra.mrb[0].mxu0 %v283
      %v470 = vpop.f32.mrb[0].mxu0
      %v471 = vadd.f32 %v240, %v470
      %v472 = vpop.f32.mrb[0].mxu0
      %473 = vmatprep.mubr.f32.mxu0 0.0
      %474 = vmatmul.mubr.f32.gmra.mrb[0].mxu0 %v286
      %v475 = vpop.f32.mrb[0].mxu0
      %v476 = vadd.f32 %v240, %v475
      %v477 = vpop.f32.mrb[0].mxu0
      %478 = vmatprep.mubr.f32.mxu0 0.0
      %479 = vmatmul.mubr.f32.gmra.mrb[0].mxu0 %v289
      %v480 = vpop.f32.mrb[0].mxu0
      %v481 = vadd.f32 %v240, %v480
      %v482 = vpop.f32.mrb[0].mxu0
      %483 = vmatprep.mubr.f32.mxu0 0.0
      %484 = vmatmul.mubr.f32.gmra.mrb[0].mxu0 %v292
      %v485 = vpop.f32.mrb[0].mxu0
      %v486 = vadd.f32 %v240, %v485
      %v487 = vpop.f32.mrb[0].mxu0
      %488 = vmatprep.mubr.f32.mxu0 0.0
      %489 = vmatmul.mubr.f32.gmra.mrb[0].mxu0 %v295
      %v490 = vpop.f32.mrb[0].mxu0
      %v491 = vadd.f32 %v240, %v490
      %v492 = vpop.f32.mrb[0].mxu0
      %493 = vmatprep.mubr.f32.mxu0 0.0
      %494 = vmatmul.mubr.f32.gmra.mrb[0].mxu0 %v298
      %v495 = vpop.f32.mrb[0].mxu0
      %v496 = vadd.f32 %v240, %v495
      %v497 = vpop.f32.mrb[0].mxu0
      %498 = vmatprep.mubr.f32.mxu0 0.0
      %499 = vmatmul.mubr.f32.gmra.mrb[0].mxu0 %v301
      %v500 = vpop.f32.mrb[0].mxu0
      %v501 = vadd.f32 %v240, %v500
      %v502 = vpop.f32.mrb[0].mxu0
      %503 = vmatprep.mubr.f32.mxu0 0.0
      %504 = vmatmul.mubr.f32.gmra.mrb[0].mxu0 %v304
      %v505 = vpop.f32.mrb[0].mxu0
      %v506 = vadd.f32 %v240, %v505
      %v507 = vpop.f32.mrb[0].mxu0
      %508 = vmatprep.mubr.f32.mxu0 0.0
      %509 = vmatmul.mubr.f32.gmra.mrb[0].mxu0 %v307
      %v510 = vpop.f32.mrb[0].mxu0
      %v511 = vadd.f32 %v240, %v510
      %v512 = vpop.f32.mrb[0].mxu0
      %513 = vmatprep.mubr.f32.mxu0 0.0
      %514 = vmatmul.mubr.f32.gmra.mrb[0].mxu0 %v310
      %v515 = vpop.f32.mrb[0].mxu0
      %v516 = vadd.f32 %v240, %v515
      %v517 = vpop.f32.mrb[0].mxu0
      %518 = vmatprep.mubr.f32.mxu0 0.0
      %519 = vmatmul.mubr.f32.gmra.mrb[0].mxu0 %v313
      %v520 = vpop.f32.mrb[0].mxu0
      %v521 = vadd.f32 %v240, %v520
      %v522 = vpop.f32.mrb[0].mxu0
      %523 = vmatprep.mubr.f32.mxu0 0.0
      %524 = vmatmul.mubr.f32.gmra.mrb[0].mxu0 %v316
      %v525 = vpop.f32.mrb[0].mxu0
      %v526 = vadd.f32 %v240, %v525
      %v527 = vpop.f32.mrb[0].mxu0
      %528 = vmatprep.mubr.f32.mxu0 0.0
      %529 = vmatmul.mubr.f32.gmra.mrb[0].mxu0 %v319
      %v530 = vpop.f32.mrb[0].mxu0
      %v531 = vadd.f32 %v240, %v530
      %v532 = vpop.f32.mrb[0].mxu0
      %533 = vmatprep.mubr.f32.mxu0 0.0
      %534 = vmatmul.mubr.f32.gmra.mrb[0].mxu0 %v322
      %v535 = vpop.f32.mrb[0].mxu0
      %v536 = vadd.f32 %v240, %v535
      %v537 = vpop.f32.mrb[0].mxu0
      %538 = vmatprep.mubr.f32.mxu0 0.0
      %539 = vmatmul.mubr.f32.gmra.mrb[0].mxu0 %v325
      %v540 = vpop.f32.mrb[0].mxu0
      %v541 = vadd.f32 %v240, %v540
      %v542 = vpop.f32.mrb[0].mxu0
      %543 = vmatprep.mubr.f32.mxu0 0.0
      %544 = vmatmul.mubr.f32.gmra.mrb[0].mxu0 %v328
      %v545 = vpop.f32.mrb[0].mxu0
      %v546 = vadd.f32 %v240, %v545
      %v547 = vpop.f32.mrb[0].mxu0
      %548 = vmatprep.mubr.f32.mxu0 0.0
      %549 = vmatmul.mubr.f32.gmra.mrb[0].mxu0 %v331
      %v550 = vpop.f32.mrb[0].mxu0
      %v551 = vadd.f32 %v240, %v550
      %v552 = vpop.f32.mrb[0].mxu0
      %553 = vmatprep.mubr.f32.mxu0 0.0
      %554 = vmatmul.mubr.f32.gmra.mrb[0].mxu0 %v334
      %v555 = vpop.f32.mrb[0].mxu0
      %v556 = vadd.f32 %v240, %v555
      %v557 = vpop.f32.mrb[0].mxu0
      %558 = vmatprep.mubr.f32.mxu0 0.0
      %559 = vmatmul.mubr.f32.gmra.mrb[0].mxu0 %v337
      %v560 = vpop.f32.mrb[0].mxu0
      %v561 = vadd.f32 %v240, %v560
      %v562 = vpop.f32.mrb[0].mxu0
      %563 = vdwg.mxu0
      %v564 = vld [vmem:[%s3] sm:$0x1]
      %v566 = vlaneseq
      %v567 = vshrl.u32 %v566, 7
      %v568 = vsub.s32 0, %v567
      %v569 = vrot.slane %v564, %v568
      %v571 = vmax.f32 %v406, %v569
      %v572 = vmax.f32 %v411, %v569
      %v573 = vmax.f32 %v416, %v569
      %v574 = vmax.f32 %v421, %v569
      %v575 = vmax.f32 %v426, %v569
      %v576 = vmax.f32 %v431, %v569
      %v577 = vmax.f32 %v436, %v569
      %v578 = vmax.f32 %v441, %v569
      %v579 = vmax.f32 %v446, %v569
      %v580 = vmax.f32 %v451, %v569
      %v581 = vmax.f32 %v456, %v569
      %v582 = vmax.f32 %v461, %v569
      %v583 = vmax.f32 %v466, %v569
      %v584 = vmax.f32 %v471, %v569
      %v585 = vmax.f32 %v476, %v569
      %v586 = vmax.f32 %v481, %v569
      %v587 = vmax.f32 %v486, %v569
      %v588 = vmax.f32 %v491, %v569
      %v589 = vmax.f32 %v496, %v569
      %v590 = vmax.f32 %v501, %v569
      %v591 = vmax.f32 %v506, %v569
      %v592 = vmax.f32 %v511, %v569
      %v593 = vmax.f32 %v516, %v569
      %v594 = vmax.f32 %v521, %v569
      %v595 = vmax.f32 %v526, %v569
      %v596 = vmax.f32 %v531, %v569
      %v597 = vmax.f32 %v536, %v569
      %v598 = vmax.f32 %v541, %v569
      %v599 = vmax.f32 %v546, %v569
      %v600 = vmax.f32 %v551, %v569
      %v601 = vmax.f32 %v556, %v569
      %v602 = vmax.f32 %v561, %v569
      %vm603 = vcmask 785408
      %604 = vst.msk [vmem:[%s199] sm:$0xff] %vm603, %v571
      %605 = vst.msk [vmem:[%s199 + $0x8] sm:$0xff] %vm603, %v572
      %606 = vst.msk [vmem:[%s199 + $0x10] sm:$0xff] %vm603, %v573
      %607 = vst.msk [vmem:[%s199 + $0x18] sm:$0xff] %vm603, %v574
      %608 = vst.msk [vmem:[%s199 + $0x20] sm:$0xff] %vm603, %v575
      %609 = vst.msk [vmem:[%s199 + $0x28] sm:$0xff] %vm603, %v576
      %610 = vst.msk [vmem:[%s199 + $0x30] sm:$0xff] %vm603, %v577
      %611 = vst.msk [vmem:[%s199 + $0x38] sm:$0xff] %vm603, %v578
      %612 = vst.msk [vmem:[%s199 + $0x40] sm:$0xff] %vm603, %v579
      %613 = vst.msk [vmem:[%s199 + $0x48] sm:$0xff] %vm603, %v580
      %614 = vst.msk [vmem:[%s199 + $0x50] sm:$0xff] %vm603, %v581
      %615 = vst.msk [vmem:[%s199 + $0x58] sm:$0xff] %vm603, %v582
      %616 = vst.msk [vmem:[%s199 + $0x60] sm:$0xff] %vm603, %v583
      %617 = vst.msk [vmem:[%s199 + $0x68] sm:$0xff] %vm603, %v584
      %618 = vst.msk [vmem:[%s199 + $0x70] sm:$0xff] %vm603, %v585
      %619 = vst.msk [vmem:[%s199 + $0x78] sm:$0xff] %vm603, %v586
      %620 = vst.msk [vmem:[%s199 + $0x80] sm:$0xff] %vm603, %v587
      %621 = vst.msk [vmem:[%s199 + $0x88] sm:$0xff] %vm603, %v588
      %622 = vst.msk [vmem:[%s199 + $0x90] sm:$0xff] %vm603, %v589
      %623 = vst.msk [vmem:[%s199 + $0x98] sm:$0xff] %vm603, %v590
      %624 = vst.msk [vmem:[%s199 + $0xa0] sm:$0xff] %vm603, %v591
      %625 = vst.msk [vmem:[%s199 + $0xa8] sm:$0xff] %vm603, %v592
      %626 = vst.msk [vmem:[%s199 + $0xb0] sm:$0xff] %vm603, %v593
      %627 = vst.msk [vmem:[%s199 + $0xb8] sm:$0xff] %vm603, %v594
      %628 = vst.msk [vmem:[%s199 + $0xc0] sm:$0xff] %vm603, %v595
      %629 = vst.msk [vmem:[%s199 + $0xc8] sm:$0xff] %vm603, %v596
      %630 = vst.msk [vmem:[%s199 + $0xd0] sm:$0xff] %vm603, %v597
      %631 = vst.msk [vmem:[%s199 + $0xd8] sm:$0xff] %vm603, %v598
      %632 = vst.msk [vmem:[%s199 + $0xe0] sm:$0xff] %vm603, %v599
      %633 = vst.msk [vmem:[%s199 + $0xe8] sm:$0xff] %vm603, %v600
      %634 = vst.msk [vmem:[%s199 + $0xf0] sm:$0xff] %vm603, %v601
      %635 = vst.msk [vmem:[%s199 + $0xf8] sm:$0xff] %vm603, %v602
      %s636 = smul.u32 32, %s15
      %p637 = scmp.lt.s32.totalorder %s636, 63
      %s638 = scalar_select %p637, %s636, 63
      %s639 = smul.addr %s638, 8
      %s640 = scalar_lea.vmem %s4, %s639
      // Predicated region
      $region37: #{tpu_custom_call.1} parent=35 // pred_check
        %p641 = pneg %p122
      $region38: #{tpu_custom_call.1} parent=35 // pred_check_branch
        %643 = sbr.rel (%p641) target = $region40
      $region39: #{tpu_custom_call.1} parent=35 // pred_region
        %s644 = smul.u32 32, %s15
      $region40: #{tpu_custom_call.1} parent=35 // pred_fallthru
        _
    $region36: #{tpu_custom_call.1} parent=5 // pred_fallthru
      _
    %p645 = scmp.le.s32.totalorder 2, %s10
    // Predicated region
    $region41: #{tpu_custom_call.1} parent=5 // pred_check
      %p646 = pneg %p645
    $region42: #{tpu_custom_call.1} parent=5 // pred_check_branch
      %648 = sbr.rel (%p646) target = $region44
    $region43: #{tpu_custom_call.1} parent=5 // pred_region
      %s649 = ssub.s32 %s10, 2
      // Predicated region
      $region45: #{tpu_custom_call.1} parent=43 // pred_check
        %p650 = pneg %p128
      $region46: #{tpu_custom_call.1} parent=43 // pred_check_branch
        %652 = sbr.rel (%p650) target = $region48
      $region47: #{tpu_custom_call.1} parent=43 // pred_region
        %s653 = smul.u32 32, %s16
        %p654 = scmp.lt.s32.totalorder %s653, 63
        %s655 = scalar_select %p654, %s653, 63
        %s656 = smul.addr %s655, 8
        %s657 = scalar_lea.vmem %s4, %s656
      $region48: #{tpu_custom_call.1} parent=43 // pred_fallthru
        _
    $region44: #{tpu_custom_call.1} parent=5 // pred_fallthru
      _
  $region6: #{tpu_custom_call.1} parent=0 // loop_footer
    %s14 = sadd.s32 1, %s10
  $region7: #{tpu_custom_call.1} parent=0 // loop_footer_branch
    %9 = sbr.rel target = $region3
  $region8: #{tpu_custom_call.1} parent=0 // loop_exit
    _

</llo_original>
